<compile_context>
chip_gen: v6e
topology: v6e:2x2x1
jax: 0.10.0
libtpu: 0.0.40
codegen_flags: <defaults>
</compile_context>

<pallas_src>
import jax
import jax.numpy as jnp
from jax.experimental import pallas as pl
from jax.experimental.pallas import tpu as pltpu

block_size = 8
n_embd = 32
vocab_size = 65  # e.g. tiny-shakespeare charset size


def _logits_from_refs(idx, tok_ref, pos_ref, w_ref, b_ref, T):
    """Full forward to logits for flattened idx of shape (N, 1) int32."""
    N = idx.shape[0]
    V, E = tok_ref.shape

    # token embedding gather as a one-hot MXU matmul: (N,V) @ (V,E)
    iota_v = jax.lax.broadcasted_iota(jnp.int32, (N, V), 1)
    tok_onehot = (iota_v == idx).astype(jnp.float32)
    tok_emb = jnp.dot(tok_onehot, tok_ref[...], preferred_element_type=jnp.float32)

    # position embedding: row n uses position n % T (rows are (B, T) flattened)
    row = jax.lax.broadcasted_iota(jnp.int32, (N, T), 0)
    col = jax.lax.broadcasted_iota(jnp.int32, (N, T), 1)
    if (T & (T - 1)) == 0:
        pos_id = row & (T - 1)          # T is a power of two (block_size = 8)
    else:
        pos_id = row % T
    pos_onehot = (pos_id == col).astype(jnp.float32)
    pos_emb = jnp.dot(pos_onehot, pos_ref[0:T, :], preferred_element_type=jnp.float32)

    x = tok_emb + pos_emb                                            # (N, E)
    logits = jnp.dot(x, w_ref[...], preferred_element_type=jnp.float32) + b_ref[...]
    return logits                                                    # (N, V)


def _make_logits_kernel(T):
    """Inference path (targets=None): logits only, no cross-entropy work."""
    def kernel(idx_ref, tok_ref, pos_ref, w_ref, b_ref, logits_ref):
        logits_ref[...] = _logits_from_refs(idx_ref[...], tok_ref, pos_ref,
                                            w_ref, b_ref, T)
    return kernel


def _make_loss_kernel(T, n_rows):
    """Training path: logits + mean cross-entropy over all n_rows rows."""
    def kernel(it_ref, tok_ref, pos_ref, w_ref, b_ref, logits_ref, loss_ref):
        it = it_ref[...]                      # (N, 2) int32: [idx | targets]
        idx = it[:, 0:1]
        tgt = it[:, 1:2]
        logits = _logits_from_refs(idx, tok_ref, pos_ref, w_ref, b_ref, T)
        logits_ref[...] = logits

        # mean cross-entropy (no padded rows, so no validity mask needed)
        m = jnp.max(logits, axis=-1, keepdims=True)
        lse = m + jnp.log(jnp.sum(jnp.exp(logits - m), axis=-1, keepdims=True))
        iota_v = jax.lax.broadcasted_iota(jnp.int32, logits.shape, 1)
        picked = jnp.sum(jnp.where(iota_v == tgt, logits, 0.0),
                         axis=-1, keepdims=True)
        loss_ref[0, 0] = jnp.sum(lse - picked) / n_rows
    return kernel


def bigram_forward(idx, tok_table, pos_table, w, b, targets=None):
    """Mirrors BigramLanguageModel.forward: returns (logits (B*T, V), loss|None)."""
    B, T = idx.shape
    N = B * T
    V, E = tok_table.shape

    vmem = pl.BlockSpec(memory_space=pltpu.MemorySpace.VMEM)
    smem = pl.BlockSpec(memory_space=pltpu.MemorySpace.SMEM)

    tok_table = tok_table.astype(jnp.float32)
    pos_table = pos_table.astype(jnp.float32)
    w = w.astype(jnp.float32)
    b = b.reshape(1, V).astype(jnp.float32)

    if targets is None:
        idx_in = idx.reshape(N, 1).astype(jnp.int32)
        logits = pl.pallas_call(
            _make_logits_kernel(T),
            out_shape=jax.ShapeDtypeStruct((N, V), jnp.float32),
            in_specs=[vmem, vmem, vmem, vmem, vmem],
            out_specs=vmem,
        )(idx_in, tok_table, pos_table, w, b)
        return logits, None

    # pack idx / targets into one (N, 2) int32 operand (one DMA instead of two)
    it = jnp.stack([idx.reshape(N).astype(jnp.int32),
                    targets.reshape(N).astype(jnp.int32)], axis=1)
    logits, loss = pl.pallas_call(
        _make_loss_kernel(T, N),
        out_shape=(jax.ShapeDtypeStruct((N, V), jnp.float32),
                   jax.ShapeDtypeStruct((1, 1), jnp.float32)),
        in_specs=[vmem, vmem, vmem, vmem, vmem],
        out_specs=(vmem, smem),
    )(it, tok_table, pos_table, w, b)
    return logits, loss[0, 0]


def reference_forward(idx, tok_table, pos_table, w, b, targets):
    B, T = idx.shape
    tok_emb = tok_table[idx]                       # (B, T, E)
    pos_emb = pos_table[jnp.arange(T)]             # (T, E)
    x = tok_emb + pos_emb[None, :, :]
    logits = x @ w + b.reshape(-1)                 # (B, T, V)
    logits = logits.reshape(B * T, -1)
    tgt = targets.reshape(B * T)
    logp = jax.nn.log_softmax(logits, axis=-1)
    loss = -jnp.mean(jnp.take_along_axis(logp, tgt[:, None], axis=-1))
    return logits, loss


if __name__ == "__main__":
    B, T = 2, block_size

    key = jax.random.PRNGKey(0)
    k_tok, k_pos, k_w, k_b, k_idx, k_tgt = jax.random.split(key, 6)

    # deterministic synthetic parameters (shapes from the module __init__)
    tok_table = jax.random.normal(k_tok, (vocab_size, n_embd), dtype=jnp.float32) * 0.02
    pos_table = jax.random.normal(k_pos, (block_size, n_embd), dtype=jnp.float32) * 0.02
    w = jax.random.normal(k_w, (n_embd, vocab_size), dtype=jnp.float32) * 0.02
    b = jax.random.normal(k_b, (1, vocab_size), dtype=jnp.float32) * 0.02

    idx = jax.random.randint(k_idx, (B, T), 0, vocab_size, dtype=jnp.int32)
    targets = jax.random.randint(k_tgt, (B, T), 0, vocab_size, dtype=jnp.int32)

    # jit the step so weights stay device-resident and the tiny reshapes fuse
    fwd = jax.jit(bigram_forward)

    logits, loss = fwd(idx, tok_table, pos_table, w, b, targets)
    jax.block_until_ready((logits, loss))

    ref_logits, ref_loss = reference_forward(idx, tok_table, pos_table, w, b, targets)
    assert logits.shape == (B * T, vocab_size)
    assert jnp.allclose(logits, ref_logits, rtol=1e-4, atol=1e-5)
    assert jnp.allclose(loss, ref_loss, rtol=1e-4, atol=1e-5)

    # targets=None path (loss is None), as in generate()
    logits_only, no_loss = fwd(idx, tok_table, pos_table, w, b, None)
    jax.block_until_ready(logits_only)
    assert no_loss is None
    assert jnp.allclose(logits_only, ref_logits, rtol=1e-4, atol=1e-5)

    print("KERNEL_OK")
</pallas_src>

<mosaic_0001>
module attributes {stable_mosaic.version = 11 : i64} {
  func.func @kernel(%arg0: memref<16x2xi32, #tpu.memory_space<vmem>>, %arg1: memref<65x32xf32, #tpu.memory_space<vmem>>, %arg2: memref<8x32xf32, #tpu.memory_space<vmem>>, %arg3: memref<32x65xf32, #tpu.memory_space<vmem>>, %arg4: memref<1x65xf32, #tpu.memory_space<vmem>>, %arg5: memref<16x65xf32, #tpu.memory_space<vmem>>, %arg6: memref<1x1xf32, #tpu.memory_space<smem>>) attributes {dimension_semantics = [], scalar_prefetch = 0 : i64, scratch_operands = 0 : i64, tpu.core_type = #tpu.core_type<tc>} {
    %c0 = arith.constant 0 : index
    %c0_0 = arith.constant 0 : index
    %0 = vector.load %arg0[%c0, %c0_0] : memref<16x2xi32, #tpu.memory_space<vmem>>, vector<16x2xi32>
    %1 = vector.extract_strided_slice %0 {offsets = [0, 0], sizes = [16, 1], strides = [1, 1]} : vector<16x2xi32> to vector<16x1xi32>
    %2 = vector.extract_strided_slice %0 {offsets = [0, 1], sizes = [16, 1], strides = [1, 1]} : vector<16x2xi32> to vector<16x1xi32>
    %3 = tpu.iota {dimensions = array<i32: 1>} : vector<16x65xi32>
    %4 = vector.broadcast %1 : vector<16x1xi32> to vector<16x65xi32>
    %5 = arith.cmpi eq, %3, %4 : vector<16x65xi32>
    %6 = arith.extui %5 : vector<16x65xi1> to vector<16x65xi32>
    %7 = arith.sitofp %6 : vector<16x65xi32> to vector<16x65xf32>
    %c0_1 = arith.constant 0 : index
    %c0_2 = arith.constant 0 : index
    %8 = vector.load %arg1[%c0_1, %c0_2] : memref<65x32xf32, #tpu.memory_space<vmem>>, vector<65x32xf32>
    %cst = arith.constant dense<0.000000e+00> : vector<16x32xf32>
    %9 = tpu.matmul %7, %8, %cst {dimension_numbers = #tpu.dot_dimension_numbers<[1], [0], [0], [1], [0, 0, 1, 1], [], []>} : vector<16x65xf32>, vector<65x32xf32>, vector<16x32xf32> -> vector<16x32xf32>
    %10 = tpu.iota {dimensions = array<i32: 0>} : vector<16x8xi32>
    %11 = tpu.iota {dimensions = array<i32: 1>} : vector<16x8xi32>
    %c7_i32 = arith.constant 7 : i32
    %12 = vector.broadcast %c7_i32 : i32 to vector<16x8xi32>
    %13 = arith.andi %10, %12 : vector<16x8xi32>
    %14 = arith.cmpi eq, %13, %11 : vector<16x8xi32>
    %15 = arith.extui %14 : vector<16x8xi1> to vector<16x8xi32>
    %16 = arith.sitofp %15 : vector<16x8xi32> to vector<16x8xf32>
    %c0_3 = arith.constant 0 : index
    %c0_4 = arith.constant 0 : index
    %17 = vector.load %arg2[%c0_3, %c0_4] : memref<8x32xf32, #tpu.memory_space<vmem>>, vector<8x32xf32>
    %cst_5 = arith.constant dense<0.000000e+00> : vector<16x32xf32>
    %18 = tpu.matmul %16, %17, %cst_5 {dimension_numbers = #tpu.dot_dimension_numbers<[1], [0], [0], [1], [0, 0, 1, 1], [], []>} : vector<16x8xf32>, vector<8x32xf32>, vector<16x32xf32> -> vector<16x32xf32>
    %19 = arith.addf %9, %18 : vector<16x32xf32>
    %c0_6 = arith.constant 0 : index
    %c0_7 = arith.constant 0 : index
    %20 = vector.load %arg3[%c0_6, %c0_7] : memref<32x65xf32, #tpu.memory_space<vmem>>, vector<32x65xf32>
    %cst_8 = arith.constant dense<0.000000e+00> : vector<16x65xf32>
    %21 = tpu.matmul %19, %20, %cst_8 {dimension_numbers = #tpu.dot_dimension_numbers<[1], [0], [0], [1], [0, 0, 1, 1], [], []>} : vector<16x32xf32>, vector<32x65xf32>, vector<16x65xf32> -> vector<16x65xf32>
    %c0_9 = arith.constant 0 : index
    %c0_10 = arith.constant 0 : index
    %22 = vector.load %arg4[%c0_9, %c0_10] : memref<1x65xf32, #tpu.memory_space<vmem>>, vector<1x65xf32>
    %23 = vector.broadcast %22 : vector<1x65xf32> to vector<16x65xf32>
    %24 = arith.addf %21, %23 : vector<16x65xf32>
    %c0_11 = arith.constant 0 : index
    %c0_12 = arith.constant 0 : index
    %25 = vector.load %arg5[%c0_11, %c0_12] : memref<16x65xf32, #tpu.memory_space<vmem>>, vector<16x65xf32>
    tpu.vector_store %arg5[%c0_11, %c0_12], %24 {strides = array<i32>} : memref<16x65xf32, #tpu.memory_space<vmem>>, vector<16x65xf32>,
    %cst_13 = arith.constant dense<0xFF800000> : vector<16xf32>
    %26 = vector.multi_reduction <maximumf>, %24, %cst_13 [1] : vector<16x65xf32> to vector<16xf32>
    %27 = vector.shape_cast %26 : vector<16xf32> to vector<16x1xf32>
    %28 = vector.broadcast %27 : vector<16x1xf32> to vector<16x65xf32>
    %29 = arith.subf %24, %28 : vector<16x65xf32>
    %30 = math.exp %29 : vector<16x65xf32>
    %cst_14 = arith.constant dense<0.000000e+00> : vector<16xf32>
    %31 = vector.multi_reduction <add>, %30, %cst_14 [1] : vector<16x65xf32> to vector<16xf32>
    %32 = vector.shape_cast %31 : vector<16xf32> to vector<16x1xf32>
    %33 = math.log %32 : vector<16x1xf32>
    %34 = arith.addf %27, %33 : vector<16x1xf32>
    %35 = tpu.iota {dimensions = array<i32: 1>} : vector<16x65xi32>
    %36 = vector.broadcast %2 : vector<16x1xi32> to vector<16x65xi32>
    %37 = arith.cmpi eq, %35, %36 : vector<16x65xi32>
    %cst_15 = arith.constant 0.000000e+00 : f32
    %38 = vector.broadcast %cst_15 : f32 to vector<16x65xf32>
    %39 = arith.select %37, %24, %38 : vector<16x65xi1>, vector<16x65xf32>
    %cst_16 = arith.constant dense<0.000000e+00> : vector<16xf32>
    %40 = vector.multi_reduction <add>, %39, %cst_16 [1] : vector<16x65xf32> to vector<16xf32>
    %41 = vector.shape_cast %40 : vector<16xf32> to vector<16x1xf32>
    %42 = arith.subf %34, %41 : vector<16x1xf32>
    %43 = vector.shape_cast %42 : vector<16x1xf32> to vector<1x16x1xf32>
    %cst_17 = arith.constant dense<0.000000e+00> : vector<1xf32>
    %44 = vector.multi_reduction <add>, %43, %cst_17 [1, 2] : vector<1x16x1xf32> to vector<1xf32>
    %45 = vector.shape_cast %44 : vector<1xf32> to vector<1x1x1xf32>
    %46 = vector.extract %45[0, 0, 0] : f32 from vector<1x1x1xf32>
    %cst_18 = arith.constant 1.600000e+01 : f32
    %47 = arith.divf %46, %cst_18 : f32
    %c0_19 = arith.constant 0 : index
    %c0_20 = arith.constant 0 : index
    %48 = memref.load %arg6[%c0_19, %c0_20] : memref<1x1xf32, #tpu.memory_space<smem>>
    memref.store %47, %arg6[%c0_19, %c0_20] : memref<1x1xf32, #tpu.memory_space<smem>>
    return
  }
}

</mosaic_0001>

<llo_original>
// kernel: bigram_forward.1
$region0: #{bigram_forward.1}
  #allocation0 [shape = 'u32[]', space=smem, size = 0x4, offset = 0x4, fixed_abs, tag = 'smem constant byte address 0x4 - core index']
  #allocation1 [shape = 'u32[144,128]{1,0:T(1,128)}', space=vmem, size = 0x12000, scoped, tag = 'internal scratch']
  %s0 = inlined_call_operand.vmem [shape: s32[16,2], index: 0, kind: input, shape index: {}]
  %s1 = inlined_call_operand.vmem [shape: f32[65,32], index: 1, kind: input, shape index: {}]
  %s2 = inlined_call_operand.vmem [shape: f32[8,32], index: 2, kind: input, shape index: {}]
  %s3 = inlined_call_operand.vmem [shape: f32[32,65], index: 3, kind: input, shape index: {}]
  %s4 = inlined_call_operand.vmem [shape: f32[1,65], index: 4, kind: input, shape index: {}]
  %s5 = inlined_call_operand.hbm [shape: f32[16,65], index: 5, kind: output, shape index: {0}]
  %s6 = inlined_call_operand.hbm [shape: f32[1,1], index: 6, kind: output, shape index: {1}]
  %7 = xla_tuple %s5, %s6
  %s8 = sld [smem:[#allocation0]]
  $region38: #{bigram_forward.1} parent=0
    _
  %s10 = ssub.s32 1, %s8
  %s11 = scalar_select 0, %s10, %s8
  $region1: #{bigram_forward.1} parent=0
    #allocation2 [shape = 'u8[8192]{0}', space=vmem, size = 0x2000, scoped, tag = 'output window, operand 0, single buffered']
    #allocation3 [shape = 's32[1]{0}', space=sflag, size = 0x4, scoped, tag = 'scoped memory for bigram_forward.1']
    #allocation4 [shape = 's32[1]{0}', space=sflag, size = 0x4, scoped, tag = 'scoped memory for bigram_forward.1']
    #allocation5 [shape = 'u8[512]{0}', space=smem, size = 0x200, scoped, tag = 'output window, operand 1, single buffered']
    %12 = vsyncpa [#allocation3], 0
    %13 = vsyncpa [#allocation4], 0
    // Predicated region
    $region2: #{bigram_forward.1} parent=1 // pred_check
      _
    $region3: #{bigram_forward.1} parent=1 // pred_check_branch
      %15 = sbr.rel (0) target = $region5
    $region4: #{bigram_forward.1} parent=1 // pred_region
      _
    $region5: #{bigram_forward.1} parent=1 // pred_fallthru
      _
    // Predicated region
    $region6: #{bigram_forward.1} parent=1 // pred_check
      _
    $region7: #{bigram_forward.1} parent=1 // pred_check_branch
      %17 = sbr.rel (0) target = $region9
    $region8: #{bigram_forward.1} parent=1 // pred_region
      _
    $region9: #{bigram_forward.1} parent=1 // pred_fallthru
      _
    // Predicated region
    $region10: #{bigram_forward.1} parent=1 // pred_check
      _
    $region11: #{bigram_forward.1} parent=1 // pred_check_branch
      %19 = sbr.rel (0) target = $region13
    $region12: #{bigram_forward.1} parent=1 // pred_region
      _
    $region13: #{bigram_forward.1} parent=1 // pred_fallthru
      _
    // Predicated region
    $region14: #{bigram_forward.1} parent=1 // pred_check
      _
    $region15: #{bigram_forward.1} parent=1 // pred_check_branch
      %21 = sbr.rel (0) target = $region17
    $region16: #{bigram_forward.1} parent=1 // pred_region
      _
    $region17: #{bigram_forward.1} parent=1 // pred_fallthru
      _
    // Predicated region
    $region18: #{bigram_forward.1} parent=1 // pred_check
      _
    $region19: #{bigram_forward.1} parent=1 // pred_check_branch
      %23 = sbr.rel (0) target = $region21
    $region20: #{bigram_forward.1} parent=1 // pred_region
      _
    $region21: #{bigram_forward.1} parent=1 // pred_fallthru
      _
    %v24 = vld [vmem:[%s0] sm:$0xff]
    %v25 = vld [vmem:[%s0 + $0x8] sm:$0xff]
    %v26 = vlaneseq
    %v27 = vand.u32 %v26, 127
    %28 = vset.pattern.permute.xlu0 0
    %29 = vperm.xlu0 %28, %v24
    %v30 = vpop.permute.xlu0 %29
    %31 = vset.pattern.permute.xlu0 0
    %32 = vperm.xlu0 %31, %v25
    %v33 = vpop.permute.xlu0 %32
    %vm34 = vcmp.eq.s32.totalorder %v27, %v30
    %vm35 = vcmp.eq.s32.totalorder %v27, %v33
    %v36 = vsel %vm34, 1, 0
    %v37 = vsel %vm35, 1, 0
    %v38 = vcvt.s32.f32 %v36
    %v39 = vcvt.s32.f32 %v37
    %v40 = vld [vmem:[%s1] sm:$0xff]
    %v41 = vld [vmem:[%s1 + $0x8] sm:$0xff]
    %v42 = vld [vmem:[%s1 + $0x10] sm:$0xff]
    %v43 = vld [vmem:[%s1 + $0x18] sm:$0xff]
    %v44 = vld [vmem:[%s1 + $0x20] sm:$0xff]
    %v45 = vld [vmem:[%s1 + $0x28] sm:$0xff]
    %v46 = vld [vmem:[%s1 + $0x30] sm:$0xff]
    %v47 = vld [vmem:[%s1 + $0x38] sm:$0xff]
    %v48 = vld [vmem:[%s1 + $0x40] sm:$0x1]
    %v49 = vlaneseq
    %v50 = vshrl.u32 %v49, 7
    %v51 = vadd.s32 %v50, 8
    %v52 = vand.u32 %v50, 7
    %v53 = vand.u32 %v51, 7
    %vm54 = vcmp.eq.s32.totalorder %v52, %v27
    %vm55 = vcmp.eq.s32.totalorder %v53, %v27
    %v56 = vsel %vm54, 1, 0
    %v57 = vsel %vm55, 1, 0
    %v58 = vcvt.s32.f32 %v56
    %v59 = vcvt.s32.f32 %v57
    %v60 = vld [vmem:[%s2] sm:$0xff]
    %vm61 = vcmask 64512
    %v63 = vsel %vm61, %v58, 0
    %v66 = vsel %vm61, %v59, 0
    %68 = vmatprep.subr.mxu0 0.0
    %69 = vmatpush1.msra.mxu0 0.0
    %70 = vmatprep.subr.mxu0 0.0
    %71 = vmatpush1.msra.mxu0 0.0
    %72 = vmatprep.subr.mxu0 0.0
    %73 = vmatpush1.msra.mxu0 0.0
    %74 = vmatprep.subr.mxu0 0.0
    %75 = vmatpush1.msra.mxu0 0.0
    %76 = vmatprep.subr.mxu0 0.0
    %77 = vmatpush1.msra.mxu0 0.0
    %78 = vmatprep.subr.mxu0 0.0
    %79 = vmatpush1.msra.mxu0 0.0
    %80 = vmatprep.subr.mxu0 0.0
    %81 = vmatpush1.msra.mxu0 0.0
    %82 = vmatprep.subr.mxu0 0.0
    %83 = vmatpush1.msra.mxu0 0.0
    %84 = vmatprep.subr.mxu0 0.0
    %85 = vmatpush1.msra.mxu0 0.0
    %86 = vmatprep.subr.mxu0 0.0
    %87 = vmatpush1.msra.mxu0 0.0
    %88 = vmatprep.subr.mxu0 0.0
    %89 = vmatpush1.msra.mxu0 0.0
    %90 = vmatprep.subr.mxu0 0.0
    %91 = vmatpush1.msra.mxu0 0.0
    %92 = vmatprep.subr.mxu0 0.0
    %93 = vmatpush1.msra.mxu0 0.0
    %94 = vmatprep.subr.mxu0 0.0
    %95 = vmatpush1.msra.mxu0 0.0
    %96 = vmatprep.subr.mxu0 0.0
    %97 = vmatpush1.msra.mxu0 0.0
    %98 = vmatprep.subr.mxu0 0.0
    %99 = vmatpush1.msra.mxu0 %v60
    %100 = vmatprep.subr.mxu0 0.0
    %101 = vmatpush2.msra.mxu0 0.0
    %102 = vmatprep.subr.mxu0 0.0
    %103 = vmatpush2.msra.mxu0 0.0
    %104 = vmatprep.subr.mxu0 0.0
    %105 = vmatpush2.msra.mxu0 0.0
    %106 = vmatprep.subr.mxu0 0.0
    %107 = vmatpush2.msra.mxu0 0.0
    %108 = vmatprep.subr.mxu0 0.0
    %109 = vmatpush2.msra.mxu0 0.0
    %110 = vmatprep.subr.mxu0 0.0
    %111 = vmatpush2.msra.mxu0 0.0
    %112 = vmatprep.subr.mxu0 0.0
    %113 = vmatpush2.msra.mxu0 0.0
    %114 = vmatprep.subr.mxu0 0.0
    %115 = vmatpush2.msra.mxu0 0.0
    %116 = vmatprep.subr.mxu0 0.0
    %117 = vmatpush2.msra.mxu0 0.0
    %118 = vmatprep.subr.mxu0 0.0
    %119 = vmatpush2.msra.mxu0 0.0
    %120 = vmatprep.subr.mxu0 0.0
    %121 = vmatpush2.msra.mxu0 0.0
    %122 = vmatprep.subr.mxu0 0.0
    %123 = vmatpush2.msra.mxu0 0.0
    %124 = vmatprep.subr.mxu0 0.0
    %125 = vmatpush2.msra.mxu0 0.0
    %126 = vmatprep.subr.mxu0 0.0
    %127 = vmatpush2.msra.mxu0 0.0
    %128 = vmatprep.subr.mxu0 0.0
    %129 = vmatpush2.msra.mxu0 0.0
    %130 = vmatprep.subr.mxu0 0.0
    %131 = vmatpush2.msra.mxu0 0.0
    %132 = vmatprep.mubr.f32.mxu0 0.0
    %133 = vmatmul.mubr.f32.gmra.mxu0 %v63
    %v134 = vpop.f32.mrf.mxu0
    %v135 = vadd.f32 0.0, %v134
    %v136 = vpop.f32.mrf.mxu0
    %137 = vmatprep.mubr.f32.mxu0 0.0
    %138 = vmatmul.mubr.f32.gmra.mxu0 %v66
    %v139 = vpop.f32.mrf.mxu0
    %v140 = vadd.f32 0.0, %v139
    %v141 = vpop.f32.mrf.mxu0
    %142 = vdwg.mxu0
    %vm143 = vcmask 531456
    %v145 = vsel %vm143, %v38, 0
    %v148 = vsel %vm143, %v39, 0
    %vm150 = vcmask 1040384
    %v152 = vsel %vm150, %v48, 0
    %154 = vmatprep.subr.mxu0 0.0
    %155 = vmatpush1.msra.mxu0 0.0
    %156 = vmatprep.subr.mxu0 0.0
    %157 = vmatpush1.msra.mxu0 0.0
    %158 = vmatprep.subr.mxu0 0.0
    %159 = vmatpush1.msra.mxu0 0.0
    %160 = vmatprep.subr.mxu0 0.0
    %161 = vmatpush1.msra.mxu0 0.0
    %162 = vmatprep.subr.mxu0 0.0
    %163 = vmatpush1.msra.mxu0 0.0
    %164 = vmatprep.subr.mxu0 0.0
    %165 = vmatpush1.msra.mxu0 0.0
    %166 = vmatprep.subr.mxu0 0.0
    %167 = vmatpush1.msra.mxu0 0.0
    %168 = vmatprep.subr.mxu0 0.0
    %169 = vmatpush1.msra.mxu0 %v152
    %170 = vmatprep.subr.mxu0 0.0
    %171 = vmatpush1.msra.mxu0 %v47
    %172 = vmatprep.subr.mxu0 0.0
    %173 = vmatpush1.msra.mxu0 %v46
    %174 = vmatprep.subr.mxu0 0.0
    %175 = vmatpush1.msra.mxu0 %v45
    %176 = vmatprep.subr.mxu0 0.0
    %177 = vmatpush1.msra.mxu0 %v44
    %178 = vmatprep.subr.mxu0 0.0
    %179 = vmatpush1.msra.mxu0 %v43
    %180 = vmatprep.subr.mxu0 0.0
    %181 = vmatpush1.msra.mxu0 %v42
    %182 = vmatprep.subr.mxu0 0.0
    %183 = vmatpush1.msra.mxu0 %v41
    %184 = vmatprep.subr.mxu0 0.0
    %185 = vmatpush1.msra.mxu0 %v40
    %186 = vmatprep.subr.mxu0 0.0
    %187 = vmatpush2.msra.mxu0 0.0
    %188 = vmatprep.subr.mxu0 0.0
    %189 = vmatpush2.msra.mxu0 0.0
    %190 = vmatprep.subr.mxu0 0.0
    %191 = vmatpush2.msra.mxu0 0.0
    %192 = vmatprep.subr.mxu0 0.0
    %193 = vmatpush2.msra.mxu0 0.0
    %194 = vmatprep.subr.mxu0 0.0
    %195 = vmatpush2.msra.mxu0 0.0
    %196 = vmatprep.subr.mxu0 0.0
    %197 = vmatpush2.msra.mxu0 0.0
    %198 = vmatprep.subr.mxu0 0.0
    %199 = vmatpush2.msra.mxu0 0.0
    %200 = vmatprep.subr.mxu0 0.0
    %201 = vmatpush2.msra.mxu0 0.0
    %202 = vmatprep.subr.mxu0 0.0
    %203 = vmatpush2.msra.mxu0 0.0
    %204 = vmatprep.subr.mxu0 0.0
    %205 = vmatpush2.msra.mxu0 0.0
    %206 = vmatprep.subr.mxu0 0.0
    %207 = vmatpush2.msra.mxu0 0.0
    %208 = vmatprep.subr.mxu0 0.0
    %209 = vmatpush2.msra.mxu0 0.0
    %210 = vmatprep.subr.mxu0 0.0
    %211 = vmatpush2.msra.mxu0 0.0
    %212 = vmatprep.subr.mxu0 0.0
    %213 = vmatpush2.msra.mxu0 0.0
    %214 = vmatprep.subr.mxu0 0.0
    %215 = vmatpush2.msra.mxu0 0.0
    %216 = vmatprep.subr.mxu0 0.0
    %217 = vmatpush2.msra.mxu0 0.0
    %218 = vmatprep.mubr.f32.mxu0 0.0
    %219 = vmatmul.mubr.f32.gmra.mxu0 %v145
    %v220 = vpop.f32.mrf.mxu0
    %v221 = vadd.f32 %v135, %v220
    %v222 = vpop.f32.mrf.mxu0
    %223 = vmatprep.mubr.f32.mxu0 0.0
    %224 = vmatmul.mubr.f32.gmra.mxu0 %v148
    %v225 = vpop.f32.mrf.mxu0
    %v226 = vadd.f32 %v140, %v225
    %v227 = vpop.f32.mrf.mxu0
    %228 = vdwg.mxu0
    %v229 = vld [vmem:[%s3] sm:$0xff]
    %v230 = vld [vmem:[%s3 + $0x8] sm:$0xff]
    %v231 = vld [vmem:[%s3 + $0x10] sm:$0xff]
    %v232 = vld [vmem:[%s3 + $0x18] sm:$0xff]
    %v233 = vld [vmem:[%s4] sm:$0x1]
    %v235 = vlaneseq
    %v236 = vshrl.u32 %v235, 7
    %v237 = vsub.s32 0, %v236
    %v238 = vrot.slane %v233, %v237
    %vm240 = vcmask 261120
    %v242 = vsel %vm240, %v221, 0
    %v245 = vsel %vm240, %v226, 0
    %247 = vmatprep.subr.mxu0 0.0
    %248 = vmatpush1.msra.mxu0 0.0
    %249 = vmatprep.subr.mxu0 0.0
    %250 = vmatpush1.msra.mxu0 0.0
    %251 = vmatprep.subr.mxu0 0.0
    %252 = vmatpush1.msra.mxu0 0.0
    %253 = vmatprep.subr.mxu0 0.0
    %254 = vmatpush1.msra.mxu0 0.0
    %255 = vmatprep.subr.mxu0 0.0
    %256 = vmatpush1.msra.mxu0 0.0
    %257 = vmatprep.subr.mxu0 0.0
    %258 = vmatpush1.msra.mxu0 0.0
    %259 = vmatprep.subr.mxu0 0.0
    %260 = vmatpush1.msra.mxu0 0.0
    %261 = vmatprep.subr.mxu0 0.0
    %262 = vmatpush1.msra.mxu0 0.0
    %263 = vmatprep.subr.mxu0 0.0
    %264 = vmatpush1.msra.mxu0 0.0
    %265 = vmatprep.subr.mxu0 0.0
    %266 = vmatpush1.msra.mxu0 0.0
    %267 = vmatprep.subr.mxu0 0.0
    %268 = vmatpush1.msra.mxu0 0.0
    %269 = vmatprep.subr.mxu0 0.0
    %270 = vmatpush1.msra.mxu0 0.0
    %271 = vmatprep.subr.mxu0 0.0
    %272 = vmatpush1.msra.mxu0 %v232
    %273 = vmatprep.subr.mxu0 0.0
    %274 = vmatpush1.msra.mxu0 %v231
    %275 = vmatprep.subr.mxu0 0.0
    %276 = vmatpush1.msra.mxu0 %v230
    %277 = vmatprep.subr.mxu0 0.0
    %278 = vmatpush1.msra.mxu0 %v229
    %279 = vmatprep.subr.mxu0 0.0
    %280 = vmatpush2.msra.mxu0 0.0
    %281 = vmatprep.subr.mxu0 0.0
    %282 = vmatpush2.msra.mxu0 0.0
    %283 = vmatprep.subr.mxu0 0.0
    %284 = vmatpush2.msra.mxu0 0.0
    %285 = vmatprep.subr.mxu0 0.0
    %286 = vmatpush2.msra.mxu0 0.0
    %287 = vmatprep.subr.mxu0 0.0
    %288 = vmatpush2.msra.mxu0 0.0
    %289 = vmatprep.subr.mxu0 0.0
    %290 = vmatpush2.msra.mxu0 0.0
    %291 = vmatprep.subr.mxu0 0.0
    %292 = vmatpush2.msra.mxu0 0.0
    %293 = vmatprep.subr.mxu0 0.0
    %294 = vmatpush2.msra.mxu0 0.0
    %295 = vmatprep.subr.mxu0 0.0
    %296 = vmatpush2.msra.mxu0 0.0
    %297 = vmatprep.subr.mxu0 0.0
    %298 = vmatpush2.msra.mxu0 0.0
    %299 = vmatprep.subr.mxu0 0.0
    %300 = vmatpush2.msra.mxu0 0.0
    %301 = vmatprep.subr.mxu0 0.0
    %302 = vmatpush2.msra.mxu0 0.0
    %303 = vmatprep.subr.mxu0 0.0
    %304 = vmatpush2.msra.mxu0 0.0
    %305 = vmatprep.subr.mxu0 0.0
    %306 = vmatpush2.msra.mxu0 0.0
    %307 = vmatprep.subr.mxu0 0.0
    %308 = vmatpush2.msra.mxu0 0.0
    %309 = vmatprep.subr.mxu0 0.0
    %310 = vmatpush2.msra.mxu0 0.0
    %311 = vmatprep.mubr.f32.mxu0 0.0
    %312 = vmatmul.mubr.f32.gmra.mxu0 %v242
    %v313 = vpop.f32.mrf.mxu0
    %v314 = vadd.f32 %v238, %v313
    %v315 = vpop.f32.mrf.mxu0
    %316 = vmatprep.mubr.f32.mxu0 0.0
    %317 = vmatmul.mubr.f32.gmra.mxu0 %v245
    %v318 = vpop.f32.mrf.mxu0
    %v319 = vadd.f32 %v238, %v318
    %v320 = vpop.f32.mrf.mxu0
    %321 = vdwg.mxu0
    %322 = vst.msk [vmem:[#allocation2] sm:$0xff] %vm143, %v314
    %323 = vst.msk [vmem:[#allocation2 + $0x8] sm:$0xff] %vm143, %v319
    %v324 = vsel %vm143, %v314, -inf
    %325 = vmax.xlane.f32.xlu0 %v324
    %v326 = vpop.xlane.xlu0 %325
    %v327 = vsel %vm143, %v319, -inf
    %328 = vmax.xlane.f32.xlu0 %v327
    %v329 = vpop.xlane.xlu0 %328
    %v330 = vsub.f32 %v314, %v326
    %v331 = vsub.f32 %v319, %v329
    %v332 = vmul.f32 %v330, 1.442695
    %v333 = vpow.pop %v332
    %v334 = vmul.f32 %v331, 1.442695
    %v335 = vpow.pop %v334
    %v336 = vsel %vm143, %v333, 0.0
    %337 = vadd.xlane.f32.xlu0 %v336
    %v338 = vpop.xlane.xlu0 %337
    %v339 = vsel %vm143, %v335, 0.0
    %340 = vadd.xlane.f32.xlu0 %v339
    %v341 = vpop.xlane.xlu0 %340
    %v342 = vlog2.pop %v338
    %v343 = vmul.f32 %v342, 0.6931472
    %v344 = vlog2.pop %v341
    %v345 = vmul.f32 %v344, 0.6931472
    %v346 = vadd.f32 %v326, %v343
    %v347 = vadd.f32 %v329, %v345
    %348 = vset.pattern.permute.xlu0 1
    %349 = vperm.xlu0 %348, %v24
    %v350 = vpop.permute.xlu0 %349
    %351 = vset.pattern.permute.xlu0 1
    %352 = vperm.xlu0 %351, %v25
    %v353 = vpop.permute.xlu0 %352
    %vm354 = vcmp.eq.s32.totalorder %v27, %v350
    %vm355 = vcmp.eq.s32.totalorder %v27, %v353
    %v356 = vsel %vm354, %v314, 0.0
    %v357 = vsel %vm355, %v319, 0.0
    %v358 = vsel %vm143, %v356, 0.0
    %359 = vadd.xlane.f32.xlu0 %v358
    %v360 = vpop.xlane.xlu0 %359
    %v361 = vsel %vm143, %v357, 0.0
    %362 = vadd.xlane.f32.xlu0 %v361
    %v363 = vpop.xlane.xlu0 %362
    %v364 = vsub.f32 %v346, %v360
    %v365 = vsub.f32 %v347, %v363
    %vm366 = vcmask 7168
    %v367 = vsel %vm366, %v364, 0.0
    %v368 = vsel %vm366, %v365, 0.0
    %v369 = vadd.f32 %v367, %v368
    %370 = vadd.xlane.f32.xlu0 %v369
    %v371 = vpop.xlane.xlu0 %370
    %v372 = vrot.slane %v371, 4
    %v373 = vadd.f32 %v371, %v372
    %v374 = vrot.slane %v373, 2
    %v375 = vadd.f32 %v373, %v374
    %v376 = vrot.slane %v375, 1
    %v377 = vadd.f32 %v375, %v376
    %s378 = vtos %v377
    %v379 = vrcp.pop 16.0
    %s380 = vtos %v379
    %s381 = smul.f32 %s378, %s380
    %s382 = scalar_lea.smem [#allocation5], 0
    %383 = sst [smem:[%s382]] %s381
    // Predicated region
    $region22: #{bigram_forward.1} parent=1 // pred_check
      _
    $region23: #{bigram_forward.1} parent=1 // pred_check_branch
      %385 = sbr.rel (0) target = $region25
    $region24: #{bigram_forward.1} parent=1 // pred_region
      %s387 = ssub.s32 256, 256
      %388 = vsyncadd [#allocation3], %s387
      %s389 = sshll.u32 [#allocation2], 4
      %s390 = int_to_ptr.vmem [resolvable:$true] %s389
      %395 = dma.vmem_to_hbm [thread:$0]  %s390, 256, %s5, [#allocation3], 128, 128, 8
    $region25: #{bigram_forward.1} parent=1 // pred_fallthru
      _
    // Predicated region
    $region26: #{bigram_forward.1} parent=1 // pred_check
      _
    $region27: #{bigram_forward.1} parent=1 // pred_check_branch
      %397 = sbr.rel (0) target = $region29
    $region28: #{bigram_forward.1} parent=1 // pred_region
      %s399 = ssub.s32 16, 16
      %400 = vsyncadd [#allocation4], %s399
      %403 = dma.smem_to_hbm [#allocation5], 16, %s6, [#allocation4]
    $region29: #{bigram_forward.1} parent=1 // pred_fallthru
      _
    // Predicated region
    $region30: #{bigram_forward.1} parent=1 // pred_check
      _
    $region31: #{bigram_forward.1} parent=1 // pred_check_branch
      %405 = sbr.rel (0) target = $region33
    $region32: #{bigram_forward.1} parent=1 // pred_region
      %406 = dma.done [#allocation3], 256
    $region33: #{bigram_forward.1} parent=1 // pred_fallthru
      _
    // Predicated region
    $region34: #{bigram_forward.1} parent=1 // pred_check
      _
    $region35: #{bigram_forward.1} parent=1 // pred_check_branch
      %408 = sbr.rel (0) target = $region37
    $region36: #{bigram_forward.1} parent=1 // pred_region
      %409 = dma.done [#allocation4], 16
    $region37: #{bigram_forward.1} parent=1 // pred_fallthru
      _
    %410 = sfence
    %411 = vsyncpa [#allocation3], 1
    %412 = vsyncpa [#allocation4], 1

</llo_original>
